<compile_context>
chip_gen: v6e
topology: v6e:2x2x1
jax: 0.10.0
libtpu: 0.0.40
codegen_flags: <defaults>
</compile_context>

<pallas_src>
import math
import functools

import jax
import jax.numpy as jnp
from jax import lax
from jax.experimental import pallas as pl
from jax.experimental.pallas import tpu as pltpu


def _pe_dropout_kernel(seed_ref, x_ref, pe_ref, o_ref, *, p, tile_seq, batch, d_model):
    # x_ref: (TS, B, D), pe_ref: (TS, 1, D) -> broadcast add over the batch axis.
    y = x_ref[...].astype(jnp.float32) + pe_ref[...].astype(jnp.float32)

    if p > 0.0:
        shp = y.shape
        # Global element index = ((tile*TS + s) * B + b) * D + d, hashed with the
        # seed.  All integer math stays in 32-bit (wrapping is fine for hashing).
        s_i = lax.broadcasted_iota(jnp.int32, shp, 0).astype(jnp.uint32)
        b_i = lax.broadcasted_iota(jnp.int32, shp, 1).astype(jnp.uint32)
        d_i = lax.broadcasted_iota(jnp.int32, shp, 2).astype(jnp.uint32)
        tile = pl.program_id(0).astype(jnp.uint32)
        seed_u = seed_ref[0].astype(jnp.uint32)

        row = tile * jnp.uint32(tile_seq) + s_i
        gidx = (row * jnp.uint32(batch) + b_i) * jnp.uint32(d_model) + d_i

        # Murmur3-style finalizer -> well-mixed 32 random bits per element.
        z = gidx + seed_u * jnp.uint32(0x9E3779B9)
        z = (z ^ (z >> jnp.uint32(16))) * jnp.uint32(0x85EBCA6B)
        z = (z ^ (z >> jnp.uint32(13))) * jnp.uint32(0xC2B2AE35)
        z = z ^ (z >> jnp.uint32(16))

        # Top 31 bits as a non-negative int32 uniform in [0, 2**31).
        r31 = (z >> jnp.uint32(1)).astype(jnp.int32)
        thresh = jnp.int32(min(int(round(p * (1 << 31))), (1 << 31) - 1))
        keep = r31 >= thresh  # P(keep) = 1 - p (up to 2**-31 quantization)
        y = jnp.where(keep, y * jnp.float32(1.0 / (1.0 - p)), jnp.float32(0.0))

    o_ref[...] = y.astype(o_ref.dtype)


def make_pe_table(d_model: int, max_len: int = 5000) -> jnp.ndarray:
    """Deterministic positional-encoding buffer, shape (max_len, 1, d_model)."""
    position = jnp.arange(max_len, dtype=jnp.float32)[:, None]  # (L, 1)
    div_term = jnp.exp(
        jnp.arange(0, d_model, 2, dtype=jnp.float32) * (-math.log(10000.0) / d_model)
    )  # (D/2,)
    pe = jnp.zeros((max_len, 1, d_model), dtype=jnp.float32)
    pe = pe.at[:, 0, 0::2].set(jnp.sin(position * div_term))
    pe = pe.at[:, 0, 1::2].set(jnp.cos(position * div_term))
    return pe


def _choose_tile_seq(seq_len, batch, d_model, itemsize, vmem_budget_bytes=8 * 1024 * 1024):
    """Largest seq tile whose double-buffered x/out/pe tiles fit a ~8 MiB budget
    (safe for v5e/v6e 128 MiB and v7x 64 MiB VMEM with the 32 MiB scoped limit)."""
    bytes_per_seq_row = 2 * (2 * batch * d_model * itemsize) + 2 * d_model * itemsize
    ts = max(1, vmem_budget_bytes // bytes_per_seq_row)
    ts = min(int(ts), int(seq_len))
    if ts >= 8:
        ts -= ts % 8  # sublane-friendly leading dim
    return max(1, ts)


def positional_encoding_forward(x, pe_table, *, dropout_p=0.1, seed=0, train=True,
                                tile_seq=None):
    """x: (seq_len, batch, d_model) -> same shape/dtype (x + pe, then dropout)."""
    seq_len, batch, d_model = x.shape
    pe_slice = pe_table[:seq_len].astype(x.dtype)  # (S, 1, D)
    p_eff = float(dropout_p) if train else 0.0

    if tile_seq is None:
        tile_seq = _choose_tile_seq(seq_len, batch, d_model, x.dtype.itemsize)
    tile_seq = int(min(tile_seq, seq_len))
    grid = (pl.cdiv(seq_len, tile_seq),)

    kernel = functools.partial(
        _pe_dropout_kernel, p=p_eff, tile_seq=tile_seq, batch=batch, d_model=d_model
    )

    grid_spec = pltpu.PrefetchScalarGridSpec(
        num_scalar_prefetch=1,  # seed (SMEM), passed positionally to index_maps
        grid=grid,
        in_specs=[
            pl.BlockSpec((tile_seq, batch, d_model), lambda i, seed_ref: (i, 0, 0)),
            pl.BlockSpec((tile_seq, 1, d_model), lambda i, seed_ref: (i, 0, 0)),
        ],
        out_specs=pl.BlockSpec((tile_seq, batch, d_model), lambda i, seed_ref: (i, 0, 0)),
    )

    return pl.pallas_call(
        kernel,
        out_shape=jax.ShapeDtypeStruct(x.shape, x.dtype),
        grid_spec=grid_spec,
        compiler_params=pltpu.CompilerParams(
            dimension_semantics=("parallel",),      # v7x: shard seq tiles over 2 TCs
            vmem_limit_bytes=32 * 1024 * 1024,
        ),
    )(jnp.asarray([seed], dtype=jnp.int32), x, pe_slice)


if __name__ == "__main__":
    # Small shapes consistent with the module: seq=16, batch=2, d_model=128
    # (d_model multiple of 128 keeps stores lane-dense).
    seq_len, batch, d_model = 16, 2, 128
    dropout_p = 0.1
    key = jax.random.PRNGKey(0)
    x = jax.random.normal(key, (seq_len, batch, d_model), dtype=jnp.float32)

    pe_table = make_pe_table(d_model, max_len=5000)

    # Training mode (dropout active); tile_seq=8 -> grid of 2 seq tiles.
    y_train = positional_encoding_forward(
        x, pe_table, dropout_p=dropout_p, seed=1234, train=True, tile_seq=8
    )
    jax.block_until_ready(y_train)

    # Eval mode (dropout is identity) -- exact check against pure-JAX reference.
    y_eval = positional_encoding_forward(
        x, pe_table, dropout_p=dropout_p, seed=0, train=False, tile_seq=8
    )
    jax.block_until_ready(y_eval)

    ref = x + pe_table[:seq_len]
    assert jnp.allclose(y_eval, ref, atol=1e-6), "eval-mode mismatch vs reference"

    # Training-mode sanity: kept elements equal ref/(1-p); dropped fraction ~ p.
    kept = y_train != 0.0
    scaled_ref = ref * jnp.float32(1.0 / (1.0 - dropout_p))
    assert jnp.allclose(
        jnp.where(kept, y_train, 0.0), jnp.where(kept, scaled_ref, 0.0),
        atol=1e-5, rtol=1e-4,
    ), "train-mode kept values mismatch"
    frac_dropped = float(1.0 - jnp.mean(kept.astype(jnp.float32)))
    assert 0.02 <= frac_dropped <= 0.25, f"unexpected drop fraction {frac_dropped}"

    print("KERNEL_OK")
</pallas_src>

<mosaic_0001>
module attributes {stable_mosaic.version = 11 : i64} {
  func.func @_pe_dropout_kernel(%arg0: i32, %arg1: memref<1xi32, #tpu.memory_space<smem>>, %arg2: memref<8x2x128xf32, #tpu.memory_space<vmem>>, %arg3: memref<8x1x128xf32, #tpu.memory_space<vmem>>, %arg4: memref<8x2x128xf32, #tpu.memory_space<vmem>>) attributes {dimension_semantics = [#tpu.dimension_semantics<parallel>], iteration_bounds = array<i64: 2>, scalar_prefetch = 1 : i64, scratch_operands = 0 : i64, tpu.core_type = #tpu.core_type<tc>, window_params = [{transform_indices = @transform_0, window_bounds = array<i64: 8, 2, 128>}, {transform_indices = @transform_1, window_bounds = array<i64: 8, 1, 128>}, {transform_indices = @transform_2, window_bounds = array<i64: 8, 2, 128>}]} {
    %c0 = arith.constant 0 : index
    %c0_0 = arith.constant 0 : index
    %c0_1 = arith.constant 0 : index
    %0 = vector.load %arg2[%c0, %c0_0, %c0_1] : memref<8x2x128xf32, #tpu.memory_space<vmem>>, vector<8x2x128xf32>
    %c0_2 = arith.constant 0 : index
    %c0_3 = arith.constant 0 : index
    %c0_4 = arith.constant 0 : index
    %1 = vector.load %arg3[%c0_2, %c0_3, %c0_4] : memref<8x1x128xf32, #tpu.memory_space<vmem>>, vector<8x1x128xf32>
    %2 = vector.broadcast %1 : vector<8x1x128xf32> to vector<8x2x128xf32>
    %3 = arith.addf %0, %2 : vector<8x2x128xf32>
    %4 = tpu.iota {dimensions = array<i32: 0>} : vector<8x2x128xi32>
    %5 = tpu.iota {dimensions = array<i32: 1>} : vector<8x2x128xi32>
    %6 = tpu.iota {dimensions = array<i32: 2>} : vector<8x2x128xi32>
    %c0_5 = arith.constant 0 : index
    %7 = memref.load %arg1[%c0_5] : memref<1xi32, #tpu.memory_space<smem>>
    %c8_i32 = arith.constant 8 : i32
    %8 = arith.muli %arg0, %c8_i32 : i32
    %9 = vector.broadcast %8 : i32 to vector<8x2x128xi32>
    %10 = arith.addi %9, %4 : vector<8x2x128xi32>
    %c2_i32 = arith.constant 2 : i32
    %11 = vector.broadcast %c2_i32 : i32 to vector<8x2x128xi32>
    %12 = arith.muli %10, %11 : vector<8x2x128xi32>
    %13 = arith.addi %12, %5 : vector<8x2x128xi32>
    %c128_i32 = arith.constant 128 : i32
    %14 = vector.broadcast %c128_i32 : i32 to vector<8x2x128xi32>
    %15 = arith.muli %13, %14 : vector<8x2x128xi32>
    %16 = arith.addi %15, %6 : vector<8x2x128xi32>
    %c-1640531527_i32 = arith.constant -1640531527 : i32
    %17 = arith.muli %7, %c-1640531527_i32 : i32
    %18 = vector.broadcast %17 : i32 to vector<8x2x128xi32>
    %19 = arith.addi %16, %18 : vector<8x2x128xi32>
    %c16_i32 = arith.constant 16 : i32
    %20 = vector.broadcast %c16_i32 : i32 to vector<8x2x128xi32>
    %21 = arith.shrui %19, %20 : vector<8x2x128xi32>
    %22 = arith.xori %19, %21 : vector<8x2x128xi32>
    %c-2048144789_i32 = arith.constant -2048144789 : i32
    %23 = vector.broadcast %c-2048144789_i32 : i32 to vector<8x2x128xi32>
    %24 = arith.muli %22, %23 : vector<8x2x128xi32>
    %c13_i32 = arith.constant 13 : i32
    %25 = vector.broadcast %c13_i32 : i32 to vector<8x2x128xi32>
    %26 = arith.shrui %24, %25 : vector<8x2x128xi32>
    %27 = arith.xori %24, %26 : vector<8x2x128xi32>
    %c-1028477387_i32 = arith.constant -1028477387 : i32
    %28 = vector.broadcast %c-1028477387_i32 : i32 to vector<8x2x128xi32>
    %29 = arith.muli %27, %28 : vector<8x2x128xi32>
    %c16_i32_6 = arith.constant 16 : i32
    %30 = vector.broadcast %c16_i32_6 : i32 to vector<8x2x128xi32>
    %31 = arith.shrui %29, %30 : vector<8x2x128xi32>
    %32 = arith.xori %29, %31 : vector<8x2x128xi32>
    %c1_i32 = arith.constant 1 : i32
    %33 = vector.broadcast %c1_i32 : i32 to vector<8x2x128xi32>
    %34 = arith.shrui %32, %33 : vector<8x2x128xi32>
    %c214748365_i32 = arith.constant 214748365 : i32
    %35 = vector.broadcast %c214748365_i32 : i32 to vector<8x2x128xi32>
    %36 = arith.cmpi sge, %34, %35 : vector<8x2x128xi32>
    %cst = arith.constant 1.11111116 : f32
    %37 = vector.broadcast %cst : f32 to vector<8x2x128xf32>
    %38 = arith.mulf %3, %37 : vector<8x2x128xf32>
    %cst_7 = arith.constant 0.000000e+00 : f32
    %39 = vector.broadcast %cst_7 : f32 to vector<8x2x128xf32>
    %40 = arith.select %36, %38, %39 : vector<8x2x128xi1>, vector<8x2x128xf32>
    %c0_8 = arith.constant 0 : index
    %c0_9 = arith.constant 0 : index
    %c0_10 = arith.constant 0 : index
    %41 = vector.load %arg4[%c0_8, %c0_9, %c0_10] : memref<8x2x128xf32, #tpu.memory_space<vmem>>, vector<8x2x128xf32>
    tpu.vector_store %arg4[%c0_8, %c0_9, %c0_10], %40 {strides = array<i32>} : memref<8x2x128xf32, #tpu.memory_space<vmem>>, vector<8x2x128xf32>,
    return
  }
  func.func @transform_0(%arg0: i32, %arg1: memref<1xi32, #tpu.memory_space<smem>>) -> (i32, i32, i32) {
    %c0_i32 = arith.constant 0 : i32
    %c0_i32_0 = arith.constant 0 : i32
    %c0_i32_1 = arith.constant 0 : i32
    return %arg0, %c0_i32, %c0_i32_0 : i32, i32, i32
  }
  func.func @transform_1(%arg0: i32, %arg1: memref<1xi32, #tpu.memory_space<smem>>) -> (i32, i32, i32) {
    %c0_i32 = arith.constant 0 : i32
    %c0_i32_0 = arith.constant 0 : i32
    %c0_i32_1 = arith.constant 0 : i32
    return %arg0, %c0_i32, %c0_i32_0 : i32, i32, i32
  }
  func.func @transform_2(%arg0: i32, %arg1: memref<1xi32, #tpu.memory_space<smem>>) -> (i32, i32, i32) {
    %c0_i32 = arith.constant 0 : i32
    %c0_i32_0 = arith.constant 0 : i32
    %c0_i32_1 = arith.constant 0 : i32
    return %arg0, %c0_i32, %c0_i32_0 : i32, i32, i32
  }
}

</mosaic_0001>

<llo_original>
// kernel: tpu_custom_call.1
$region0: #{tpu_custom_call.1}
  #allocation0 [shape = 'u32[]', space=smem, size = 0x4, offset = 0x4, fixed_abs, tag = 'smem constant byte address 0x4 - core index']
  #allocation1 [shape = 'u32[144,128]{1,0:T(1,128)}', space=vmem, size = 0x12000, scoped, tag = 'internal scratch']
  #allocation2 [shape = 's32[1]{0}', space=sflag, size = 0x4, scoped, tag = 'scoped memory for tpu_custom_call.1']
  #allocation3 [shape = 's32[1]{0:T(128)S(6)}', space=smem, size = 0x200, scoped, tag = 'prefetched SMEM operand 0']
  %s0 = inlined_call_operand.<no memory space> [shape: s32[1], index: 0, kind: input, shape index: {}]
  %s1 = inlined_call_operand.hbm [shape: f32[16,2,128], index: 1, kind: input, shape index: {}]
  %s2 = inlined_call_operand.hbm [shape: f32[16,1,128], index: 2, kind: input, shape index: {}]
  %s3 = inlined_call_operand.hbm [shape: f32[16,2,128], index: 3, kind: output, shape index: {}]
  %s4 = sld [smem:[#allocation0]]
  $region49: #{tpu_custom_call.1} parent=0
    _
  %s6 = ssub.s32 1, %s4
  %s7 = scalar_select 0, %s6, %s4
  %8 = sst [smem:[#allocation3]] %s0
  $region1: #{tpu_custom_call.1} parent=0
    #allocation4 [shape = 'u8[16384]{0}', space=vmem, size = 0x4000, scoped, tag = 'input window, operand 1']
    #allocation5 [shape = 's32[2]{0}', space=sflag, size = 0x8, scoped, tag = 'scoped memory for tpu_custom_call.1']
    #allocation6 [shape = 's32[2]{0}', space=sflag, size = 0x8, scoped, tag = 'scoped memory for tpu_custom_call.1']
    #allocation7 [shape = 'u8[8192]{0}', space=vmem, size = 0x2000, scoped, tag = 'input window, operand 2']
    #allocation8 [shape = 's32[2]{0}', space=sflag, size = 0x8, scoped, tag = 'scoped memory for tpu_custom_call.1']
    #allocation9 [shape = 'u8[16384]{0}', space=vmem, size = 0x4000, scoped, tag = 'output window, operand 0']
    %9 = vsyncpa [#allocation5], 0
    %s10 = scalar_lea.sflag [#allocation5], 1
    %11 = vsyncpa %s10, 0
    %12 = vsyncpa [#allocation8], 0
    %s13 = scalar_lea.sflag [#allocation8], 1
    %14 = vsyncpa %s13, 0
    %15 = vsyncpa [#allocation6], 0
    %s16 = scalar_lea.sflag [#allocation6], 1
    %17 = vsyncpa %s16, 0
    loop: start=0, step=1, limit=4
    $region2: #{tpu_custom_call.1} parent=1 // loop_pre_header
      _
    $region3: #{tpu_custom_call.1} parent=1 // loop_header
      %s19 = sphi 0, %s23
      %p20 = scmp.ge.s32.totalorder %s19, 4
      %s29 = sphi 0, %s31
      %s32 = sphi 0, %s29
      %s33 = sphi 0, %s32
      %s49 = sphi 0, %s33
      %s55 = sphi 0, %s57
      %s58 = sphi 0, %s55
      %s59 = sphi 0, %s58
      %s75 = sphi 0, %s59
      %s81 = sphi 0, %s83
      %s84 = sphi 0, %s81
      %s85 = sphi 0, %s84
      %s101 = sphi 0, %s85
    $region4: #{tpu_custom_call.1} parent=1 // loop_header_branch
      %22 = sbr.rel (%p20) target = $region8
    $region5: #{tpu_custom_call.1} parent=1 // loop_body
      %s24 = ssub.s32 %s19, 1
      %s25 = ssub.s32 %s19, 2
      %s26 = sadd.s32 %s19, 1
      %s27 = ssub.s32 %s19, %s26
      %p28 = scmp.eq.s32.totalorder %s27, 0
      %s30 = sadd.s32 %s29, 1
      %s31 = scalar_select %p28, %s29, %s30
      %p34 = pneg %p28
      %p35 = scmp.eq.s32.totalorder %s19, 1
      %p36 = por %p34, %p35
      %p37 = scmp.ne.s32.totalorder %s29, %s32
      %p38 = scmp.eq.s32.totalorder %s19, 0
      %p39 = por %p37, %p38
      %p40 = scmp.ne.s32.totalorder %s29, %s32
      %p41 = scmp.eq.s32.totalorder %s24, 1
      %p42 = por %p40, %p41
      %p43 = scmp.ne.s32.totalorder %s32, %s33
      %p44 = scmp.eq.s32.totalorder %s24, 0
      %p45 = por %p43, %p44
      %p46 = scmp.ne.s32.totalorder %s32, %s33
      %p47 = scmp.eq.s32.totalorder %s25, 1
      %p48 = por %p46, %p47
      %p50 = scmp.ne.s32.totalorder %s33, %s49
      %p51 = scmp.eq.s32.totalorder %s25, 0
      %p52 = por %p50, %p51
      %s53 = ssub.s32 %s19, %s26
      %p54 = scmp.eq.s32.totalorder %s53, 0
      %s56 = sadd.s32 %s55, 1
      %s57 = scalar_select %p54, %s55, %s56
      %p60 = pneg %p54
      %p61 = scmp.eq.s32.totalorder %s19, 1
      %p62 = por %p60, %p61
      %p63 = scmp.ne.s32.totalorder %s55, %s58
      %p64 = scmp.eq.s32.totalorder %s19, 0
      %p65 = por %p63, %p64
      %p66 = scmp.ne.s32.totalorder %s55, %s58
      %p67 = scmp.eq.s32.totalorder %s24, 1
      %p68 = por %p66, %p67
      %p69 = scmp.ne.s32.totalorder %s58, %s59
      %p70 = scmp.eq.s32.totalorder %s24, 0
      %p71 = por %p69, %p70
      %p72 = scmp.ne.s32.totalorder %s58, %s59
      %p73 = scmp.eq.s32.totalorder %s25, 1
      %p74 = por %p72, %p73
      %p76 = scmp.ne.s32.totalorder %s59, %s75
      %p77 = scmp.eq.s32.totalorder %s25, 0
      %p78 = por %p76, %p77
      %s79 = ssub.s32 %s19, %s26
      %p80 = scmp.eq.s32.totalorder %s79, 0
      %s82 = sadd.s32 %s81, 1
      %s83 = scalar_select %p80, %s81, %s82
      %p86 = pneg %p80
      %p87 = scmp.eq.s32.totalorder %s19, 1
      %p88 = por %p86, %p87
      %p89 = scmp.ne.s32.totalorder %s81, %s84
      %p90 = scmp.eq.s32.totalorder %s19, 0
      %p91 = por %p89, %p90
      %p92 = scmp.ne.s32.totalorder %s81, %s84
      %p93 = scmp.eq.s32.totalorder %s24, 1
      %p94 = por %p92, %p93
      %p95 = scmp.ne.s32.totalorder %s84, %s85
      %p96 = scmp.eq.s32.totalorder %s24, 0
      %p97 = por %p95, %p96
      %p98 = scmp.ne.s32.totalorder %s84, %s85
      %p99 = scmp.eq.s32.totalorder %s25, 1
      %p100 = por %p98, %p99
      %p102 = scmp.ne.s32.totalorder %s85, %s101
      %p103 = scmp.eq.s32.totalorder %s25, 0
      %p104 = por %p102, %p103
      %p105 = scmp.le.s32.totalorder 1, %s19
      %p106 = scmp.lt.s32.totalorder %s19, 3
      %p107 = pnand %p105, %p106
      %p108 = pneg %p107
      // Predicated region
      $region9: #{tpu_custom_call.1} parent=5 // pred_check
        _
      $region10: #{tpu_custom_call.1} parent=5 // pred_check_branch
        %110 = sbr.rel (%p107) target = $region12
      $region11: #{tpu_custom_call.1} parent=5 // pred_region
        %s111 = ssub.s32 %s19, 1
      $region12: #{tpu_custom_call.1} parent=5 // pred_fallthru
        _
      %p112 = scmp.lt.s32.totalorder %s19, 2
      // Predicated region
      $region13: #{tpu_custom_call.1} parent=5 // pred_check
        %p113 = pneg %p112
      $region14: #{tpu_custom_call.1} parent=5 // pred_check_branch
        %115 = sbr.rel (%p113) target = $region16
      $region15: #{tpu_custom_call.1} parent=5 // pred_region
        // Predicated region
        $region17: #{tpu_custom_call.1} parent=15 // pred_check
          %p116 = pneg %p39
        $region18: #{tpu_custom_call.1} parent=15 // pred_check_branch
          %118 = sbr.rel (%p116) target = $region20
        $region19: #{tpu_custom_call.1} parent=15 // pred_region
          %s119 = sand.u32 %s29, 1
          %s120 = scalar_lea.sflag [#allocation5], %s119
          %s121 = sand.u32 %s29, 1
          %s122 = smul.addr %s121, 16
          %s123 = scalar_lea.vmem [#allocation4], %s122
          %s124 = smul.u32 8, %s19
          %s126 = ssub.s32 256, 256
          %127 = vsyncadd %s120, %s126
          %s128 = smul.addr %s124, 32
          %s129 = scalar_lea.hbm %s1, %s128
          %s130 = sshll.u32 %s123, 4
          %s131 = int_to_ptr.vmem [resolvable:$true] %s130
          %136 = dma.hbm_to_vmem [thread:$0]  %s129, 256, %s131, %s120, 32, 32, 2
        $region20: #{tpu_custom_call.1} parent=15 // pred_fallthru
          _
        // Predicated region
        $region21: #{tpu_custom_call.1} parent=15 // pred_check
          %p137 = pneg %p65
        $region22: #{tpu_custom_call.1} parent=15 // pred_check_branch
          %139 = sbr.rel (%p137) target = $region24
        $region23: #{tpu_custom_call.1} parent=15 // pred_region
          %s140 = sand.u32 %s55, 1
          %s141 = scalar_lea.sflag [#allocation8], %s140
          %s142 = sand.u32 %s55, 1
          %s143 = smul.addr %s142, 8
          %s144 = scalar_lea.vmem [#allocation7], %s143
          %s145 = smul.u32 8, %s19
          %s147 = ssub.s32 128, 128
          %148 = vsyncadd %s141, %s147
          %s149 = smul.addr %s145, 16
          %s150 = scalar_lea.hbm %s2, %s149
          %s151 = sshll.u32 %s144, 4
          %s152 = int_to_ptr.vmem [resolvable:$true] %s151
          %157 = dma.hbm_to_vmem [thread:$0]  %s150, 128, %s152, %s141, 16, 16, 1
        $region24: #{tpu_custom_call.1} parent=15 // pred_fallthru
          _
      $region16: #{tpu_custom_call.1} parent=5 // pred_fallthru
        _
      %p158 = scmp.le.s32.totalorder 1, %s19
      %p159 = scmp.lt.s32.totalorder %s19, 3
      %p160 = pnand %p158, %p159
      %p161 = pneg %p160
      // Predicated region
      $region25: #{tpu_custom_call.1} parent=5 // pred_check
        _
      $region26: #{tpu_custom_call.1} parent=5 // pred_check_branch
        %163 = sbr.rel (%p160) target = $region28
      $region27: #{tpu_custom_call.1} parent=5 // pred_region
        %s164 = ssub.s32 %s19, 1
        %s165 = sand.u32 %s32, 1
        %s166 = scalar_lea.sflag [#allocation5], %s165
        %s167 = sand.u32 %s32, 1
        %s168 = smul.addr %s167, 16
        %s169 = scalar_lea.vmem [#allocation4], %s168
        // Predicated region
        $region29: #{tpu_custom_call.1} parent=27 // pred_check
          %p170 = pneg %p45
        $region30: #{tpu_custom_call.1} parent=27 // pred_check_branch
          %172 = sbr.rel (%p170) target = $region32
        $region31: #{tpu_custom_call.1} parent=27 // pred_region
          %173 = dma.done %s166, 256
        $region32: #{tpu_custom_call.1} parent=27 // pred_fallthru
          _
        %s174 = sand.u32 %s58, 1
        %s175 = scalar_lea.sflag [#allocation8], %s174
        %s176 = sand.u32 %s58, 1
        %s177 = smul.addr %s176, 8
        %s178 = scalar_lea.vmem [#allocation7], %s177
        // Predicated region
        $region33: #{tpu_custom_call.1} parent=27 // pred_check
          %p179 = pneg %p71
        $region34: #{tpu_custom_call.1} parent=27 // pred_check_branch
          %181 = sbr.rel (%p179) target = $region36
        $region35: #{tpu_custom_call.1} parent=27 // pred_region
          %182 = dma.done %s175, 128
        $region36: #{tpu_custom_call.1} parent=27 // pred_fallthru
          _
        %s183 = sand.u32 %s32, 1
        %s184 = scalar_lea.sflag [#allocation5], %s183
        %s185 = sand.u32 %s32, 1
        %s186 = smul.addr %s185, 16
        %s187 = scalar_lea.vmem [#allocation4], %s186
        %p188 = pneg %p45
        %p189 = pneg %p42
        %s190 = sand.u32 %s58, 1
        %s191 = scalar_lea.sflag [#allocation8], %s190
        %s192 = sand.u32 %s58, 1
        %s193 = smul.addr %s192, 8
        %s194 = scalar_lea.vmem [#allocation7], %s193
        %p195 = pneg %p71
        %p196 = pneg %p68
        %p197 = pneg %p97
        %p198 = pneg %p94
        %s199 = sand.u32 %s84, 1
        %s200 = scalar_lea.sflag [#allocation6], %s199
        %s201 = sand.u32 %s84, 1
        %s202 = smul.addr %s201, 16
        %s203 = scalar_lea.vmem [#allocation9], %s202
        %s204 = smul.u32 8, %s24
        %s205 = smul.u32 8, %s24
        %s206 = smul.u32 8, %s24
        %v207 = vld [vmem:[%s169] sm:$0x3]
        %v208 = vld [vmem:[%s169 + $0x2] sm:$0x3]
        %v209 = vld [vmem:[%s169 + $0x4] sm:$0x3]
        %v210 = vld [vmem:[%s169 + $0x6] sm:$0x3]
        %v211 = vld [vmem:[%s169 + $0x8] sm:$0x3]
        %v212 = vld [vmem:[%s169 + $0xa] sm:$0x3]
        %v213 = vld [vmem:[%s169 + $0xc] sm:$0x3]
        %v214 = vld [vmem:[%s169 + $0xe] sm:$0x3]
        %v215 = vld [vmem:[%s178] sm:$0x1]
        %v216 = vld [vmem:[%s178 + $0x1] sm:$0x1]
        %v217 = vld [vmem:[%s178 + $0x2] sm:$0x1]
        %v218 = vld [vmem:[%s178 + $0x3] sm:$0x1]
        %v219 = vld [vmem:[%s178 + $0x4] sm:$0x1]
        %v220 = vld [vmem:[%s178 + $0x5] sm:$0x1]
        %v221 = vld [vmem:[%s178 + $0x6] sm:$0x1]
        %v222 = vld [vmem:[%s178 + $0x7] sm:$0x1]
        %v231 = vlaneseq
        %v232 = vshrl.u32 %v231, 7
        %v233 = vsub.s32 0, %v232
        %v234 = vrot.slane %v215, %v233
        %v235 = vlaneseq
        %v236 = vshrl.u32 %v235, 7
        %v237 = vsub.s32 0, %v236
        %v238 = vrot.slane %v216, %v237
        %v239 = vlaneseq
        %v240 = vshrl.u32 %v239, 7
        %v241 = vsub.s32 0, %v240
        %v242 = vrot.slane %v217, %v241
        %v243 = vlaneseq
        %v244 = vshrl.u32 %v243, 7
        %v245 = vsub.s32 0, %v244
        %v246 = vrot.slane %v218, %v245
        %v247 = vlaneseq
        %v248 = vshrl.u32 %v247, 7
        %v249 = vsub.s32 0, %v248
        %v250 = vrot.slane %v219, %v249
        %v251 = vlaneseq
        %v252 = vshrl.u32 %v251, 7
        %v253 = vsub.s32 0, %v252
        %v254 = vrot.slane %v220, %v253
        %v255 = vlaneseq
        %v256 = vshrl.u32 %v255, 7
        %v257 = vsub.s32 0, %v256
        %v258 = vrot.slane %v221, %v257
        %v259 = vlaneseq
        %v260 = vshrl.u32 %v259, 7
        %v261 = vsub.s32 0, %v260
        %v262 = vrot.slane %v222, %v261
        %v271 = vadd.f32 %v207, %v234
        %v272 = vadd.f32 %v208, %v238
        %v273 = vadd.f32 %v209, %v242
        %v274 = vadd.f32 %v210, %v246
        %v275 = vadd.f32 %v211, %v250
        %v276 = vadd.f32 %v212, %v254
        %v277 = vadd.f32 %v213, %v258
        %v278 = vadd.f32 %v214, %v262
        %v279 = vlaneseq
        %v280 = vshrl.u32 %v279, 7
        %v281 = vlaneseq
        %v282 = vand.u32 %v281, 127
        %s283 = sld [smem:[#allocation3]]
        %s284 = smul.u32 %s24, 8
        %v285 = vstv %s284
        %v286 = vadd.s32 %v285, 1
        %v287 = vadd.s32 %v285, 2
        %v288 = vadd.s32 %v285, 3
        %v289 = vadd.s32 %v285, 4
        %v290 = vadd.s32 %v285, 5
        %v291 = vadd.s32 %v285, 6
        %v292 = vadd.s32 %v285, 7
        %v293 = vmul.u32 %v285, 2
        %v294 = vmul.u32 %v286, 2
        %v295 = vmul.u32 %v287, 2
        %v296 = vmul.u32 %v288, 2
        %v297 = vmul.u32 %v289, 2
        %v298 = vmul.u32 %v290, 2
        %v299 = vmul.u32 %v291, 2
        %v300 = vmul.u32 %v292, 2
        %v301 = vadd.s32 %v293, %v280
        %v302 = vadd.s32 %v294, %v280
        %v303 = vadd.s32 %v295, %v280
        %v304 = vadd.s32 %v296, %v280
        %v305 = vadd.s32 %v297, %v280
        %v306 = vadd.s32 %v298, %v280
        %v307 = vadd.s32 %v299, %v280
        %v308 = vadd.s32 %v300, %v280
        %v309 = vmul.u32 %v301, 128
        %v310 = vmul.u32 %v302, 128
        %v311 = vmul.u32 %v303, 128
        %v312 = vmul.u32 %v304, 128
        %v313 = vmul.u32 %v305, 128
        %v314 = vmul.u32 %v306, 128
        %v315 = vmul.u32 %v307, 128
        %v316 = vmul.u32 %v308, 128
        %v317 = vadd.s32 %v309, %v282
        %v318 = vadd.s32 %v310, %v282
        %v319 = vadd.s32 %v311, %v282
        %v320 = vadd.s32 %v312, %v282
        %v321 = vadd.s32 %v313, %v282
        %v322 = vadd.s32 %v314, %v282
        %v323 = vadd.s32 %v315, %v282
        %v324 = vadd.s32 %v316, %v282
        %s325 = smul.u32 %s283, 2654435769
        %v326 = vstv %s325
        %v327 = vadd.s32 %v317, %v326
        %v328 = vadd.s32 %v318, %v326
        %v329 = vadd.s32 %v319, %v326
        %v330 = vadd.s32 %v320, %v326
        %v331 = vadd.s32 %v321, %v326
        %v332 = vadd.s32 %v322, %v326
        %v333 = vadd.s32 %v323, %v326
        %v334 = vadd.s32 %v324, %v326
        %v335 = vshrl.u32 %v327, 16
        %v336 = vshrl.u32 %v328, 16
        %v337 = vshrl.u32 %v329, 16
        %v338 = vshrl.u32 %v330, 16
        %v339 = vshrl.u32 %v331, 16
        %v340 = vshrl.u32 %v332, 16
        %v341 = vshrl.u32 %v333, 16
        %v342 = vshrl.u32 %v334, 16
        %v343 = vxor.u32 %v327, %v335
        %v344 = vxor.u32 %v328, %v336
        %v345 = vxor.u32 %v329, %v337
        %v346 = vxor.u32 %v330, %v338
        %v347 = vxor.u32 %v331, %v339
        %v348 = vxor.u32 %v332, %v340
        %v349 = vxor.u32 %v333, %v341
        %v350 = vxor.u32 %v334, %v342
        %v351 = vmul.u32 %v343, 2246822507
        %v352 = vmul.u32 %v344, 2246822507
        %v353 = vmul.u32 %v345, 2246822507
        %v354 = vmul.u32 %v346, 2246822507
        %v355 = vmul.u32 %v347, 2246822507
        %v356 = vmul.u32 %v348, 2246822507
        %v357 = vmul.u32 %v349, 2246822507
        %v358 = vmul.u32 %v350, 2246822507
        %v359 = vshrl.u32 %v351, 13
        %v360 = vshrl.u32 %v352, 13
        %v361 = vshrl.u32 %v353, 13
        %v362 = vshrl.u32 %v354, 13
        %v363 = vshrl.u32 %v355, 13
        %v364 = vshrl.u32 %v356, 13
        %v365 = vshrl.u32 %v357, 13
        %v366 = vshrl.u32 %v358, 13
        %v367 = vxor.u32 %v351, %v359
        %v368 = vxor.u32 %v352, %v360
        %v369 = vxor.u32 %v353, %v361
        %v370 = vxor.u32 %v354, %v362
        %v371 = vxor.u32 %v355, %v363
        %v372 = vxor.u32 %v356, %v364
        %v373 = vxor.u32 %v357, %v365
        %v374 = vxor.u32 %v358, %v366
        %v375 = vmul.u32 %v367, 3266489909
        %v376 = vmul.u32 %v368, 3266489909
        %v377 = vmul.u32 %v369, 3266489909
        %v378 = vmul.u32 %v370, 3266489909
        %v379 = vmul.u32 %v371, 3266489909
        %v380 = vmul.u32 %v372, 3266489909
        %v381 = vmul.u32 %v373, 3266489909
        %v382 = vmul.u32 %v374, 3266489909
        %v383 = vshrl.u32 %v375, 16
        %v384 = vshrl.u32 %v376, 16
        %v385 = vshrl.u32 %v377, 16
        %v386 = vshrl.u32 %v378, 16
        %v387 = vshrl.u32 %v379, 16
        %v388 = vshrl.u32 %v380, 16
        %v389 = vshrl.u32 %v381, 16
        %v390 = vshrl.u32 %v382, 16
        %v391 = vxor.u32 %v375, %v383
        %v392 = vxor.u32 %v376, %v384
        %v393 = vxor.u32 %v377, %v385
        %v394 = vxor.u32 %v378, %v386
        %v395 = vxor.u32 %v379, %v387
        %v396 = vxor.u32 %v380, %v388
        %v397 = vxor.u32 %v381, %v389
        %v398 = vxor.u32 %v382, %v390
        %v399 = vshrl.u32 %v391, 1
        %v400 = vshrl.u32 %v392, 1
        %v401 = vshrl.u32 %v393, 1
        %v402 = vshrl.u32 %v394, 1
        %v403 = vshrl.u32 %v395, 1
        %v404 = vshrl.u32 %v396, 1
        %v405 = vshrl.u32 %v397, 1
        %v406 = vshrl.u32 %v398, 1
        %vm407 = vcmp.ge.s32.totalorder %v399, 214748365
        %vm408 = vcmp.ge.s32.totalorder %v400, 214748365
        %vm409 = vcmp.ge.s32.totalorder %v401, 214748365
        %vm410 = vcmp.ge.s32.totalorder %v402, 214748365
        %vm411 = vcmp.ge.s32.totalorder %v403, 214748365
        %vm412 = vcmp.ge.s32.totalorder %v404, 214748365
        %vm413 = vcmp.ge.s32.totalorder %v405, 214748365
        %vm414 = vcmp.ge.s32.totalorder %v406, 214748365
        %v415 = vmul.f32 %v271, 1.1111112
        %v416 = vmul.f32 %v272, 1.1111112
        %v417 = vmul.f32 %v273, 1.1111112
        %v418 = vmul.f32 %v274, 1.1111112
        %v419 = vmul.f32 %v275, 1.1111112
        %v420 = vmul.f32 %v276, 1.1111112
        %v421 = vmul.f32 %v277, 1.1111112
        %v422 = vmul.f32 %v278, 1.1111112
        %v423 = vsel %vm407, %v415, 0.0
        %v424 = vsel %vm408, %v416, 0.0
        %v425 = vsel %vm409, %v417, 0.0
        %v426 = vsel %vm410, %v418, 0.0
        %v427 = vsel %vm411, %v419, 0.0
        %v428 = vsel %vm412, %v420, 0.0
        %v429 = vsel %vm413, %v421, 0.0
        %v430 = vsel %vm414, %v422, 0.0
        %431 = vst [vmem:[%s203] sm:$0x3] %v423
        %432 = vst [vmem:[%s203 + $0x2] sm:$0x3] %v424
        %433 = vst [vmem:[%s203 + $0x4] sm:$0x3] %v425
        %434 = vst [vmem:[%s203 + $0x6] sm:$0x3] %v426
        %435 = vst [vmem:[%s203 + $0x8] sm:$0x3] %v427
        %436 = vst [vmem:[%s203 + $0xa] sm:$0x3] %v428
        %437 = vst [vmem:[%s203 + $0xc] sm:$0x3] %v429
        %438 = vst [vmem:[%s203 + $0xe] sm:$0x3] %v430
        %s439 = sand.u32 %s84, 1
        %s440 = scalar_lea.sflag [#allocation6], %s439
        %s441 = sand.u32 %s84, 1
        %s442 = smul.addr %s441, 16
        %s443 = scalar_lea.vmem [#allocation9], %s442
        // Predicated region
        $region37: #{tpu_custom_call.1} parent=27 // pred_check
          %p444 = pneg %p94
        $region38: #{tpu_custom_call.1} parent=27 // pred_check_branch
          %446 = sbr.rel (%p444) target = $region40
        $region39: #{tpu_custom_call.1} parent=27 // pred_region
          %s447 = smul.u32 8, %s24
          %s449 = ssub.s32 256, 256
          %450 = vsyncadd %s440, %s449
          %s451 = smul.addr %s447, 32
          %s452 = scalar_lea.hbm %s3, %s451
          %s453 = sshll.u32 %s443, 4
          %s454 = int_to_ptr.vmem [resolvable:$true] %s453
          %459 = dma.vmem_to_hbm [thread:$0]  %s454, 256, %s452, %s440, 32, 32, 2
        $region40: #{tpu_custom_call.1} parent=27 // pred_fallthru
          _
      $region28: #{tpu_custom_call.1} parent=5 // pred_fallthru
        _
      %p460 = scmp.le.s32.totalorder 2, %s19
      // Predicated region
      $region41: #{tpu_custom_call.1} parent=5 // pred_check
        %p461 = pneg %p460
      $region42: #{tpu_custom_call.1} parent=5 // pred_check_branch
        %463 = sbr.rel (%p461) target = $region44
      $region43: #{tpu_custom_call.1} parent=5 // pred_region
        %s464 = ssub.s32 %s19, 2
        // Predicated region
        $region45: #{tpu_custom_call.1} parent=43 // pred_check
          %p465 = pneg %p100
        $region46: #{tpu_custom_call.1} parent=43 // pred_check_branch
          %467 = sbr.rel (%p465) target = $region48
        $region47: #{tpu_custom_call.1} parent=43 // pred_region
          %s468 = sand.u32 %s85, 1
          %s469 = scalar_lea.sflag [#allocation6], %s468
          %s470 = sand.u32 %s85, 1
          %s471 = smul.addr %s470, 16
          %s472 = scalar_lea.vmem [#allocation9], %s471
          %473 = dma.done %s469, 256
        $region48: #{tpu_custom_call.1} parent=43 // pred_fallthru
          _
      $region44: #{tpu_custom_call.1} parent=5 // pred_fallthru
        _
    $region6: #{tpu_custom_call.1} parent=1 // loop_footer
      %s23 = sadd.s32 1, %s19
    $region7: #{tpu_custom_call.1} parent=1 // loop_footer_branch
      %18 = sbr.rel target = $region3
    $region8: #{tpu_custom_call.1} parent=1 // loop_exit
      _
    %474 = vsyncpa [#allocation5], 1
    %s475 = scalar_lea.sflag [#allocation5], 1
    %476 = vsyncpa %s475, 1
    %477 = vsyncpa [#allocation8], 1
    %s478 = scalar_lea.sflag [#allocation8], 1
    %479 = vsyncpa %s478, 1
    %480 = vsyncpa [#allocation6], 1
    %s481 = scalar_lea.sflag [#allocation6], 1
    %482 = vsyncpa %s481, 1

</llo_original>
